<compile_context>
chip_gen: v5e
topology: v5e:2x2
jax: 0.10.0
libtpu: 0.0.40
codegen_flags: <defaults>
</compile_context>

<pallas_src>
import jax
import jax.numpy as jnp
from jax import lax
from jax.experimental import pallas as pl
from jax.experimental.pallas import tpu as pltpu

LANE = 128
NUM_SPLITS = 2                        # maps to v7x's 2 TensorCores; serial on 1-TC chips
_MIN_TILE_ROWS = 16                   # multiple of 16 -> bf16 sublane packing safe
_TARGET_BLOCK_BYTES = 2 * 1024 * 1024  # ~2 MiB per input block per grid step


# ----------------------------------------------------------------------------
# Kernel
# ----------------------------------------------------------------------------
def _drift_kernel(x_ref, y_ref, out_ref, acc_ref):
    """Streaming sum((x - y)^2) with a resident full-tile vector accumulator."""
    step = pl.program_id(1)

    @pl.when(step == 0)
    def _():
        acc_ref[...] = jnp.zeros_like(acc_ref)

    # Inputs arrive in native dtype; the f32 upcast is free VPU work hidden
    # under the (HBM-bound) DMA.
    d = x_ref[...].astype(jnp.float32) - y_ref[...].astype(jnp.float32)
    acc_ref[...] += d * d   # pure elementwise VPU work, no per-step reduce

    @pl.when(step == pl.num_programs(1) - 1)
    def _():
        # Epilogue (runs once per split): collapse the (tile_rows, 128)
        # accumulator into one (8, 128) output block. Sublane reduce into row
        # 0, remaining rows zeroed so the wrapper's tiny jnp.sum stays exact.
        total_row = jnp.sum(acc_ref[...], axis=0, keepdims=True)      # (1, 128)
        row_ids = lax.broadcasted_iota(jnp.int32, (8, LANE), 0)
        out_ref[...] = jnp.where(row_ids == 0, total_row, 0.0)


# ----------------------------------------------------------------------------
# Layout / flattening helpers
# ----------------------------------------------------------------------------
def _round_up(x: int, m: int) -> int:
    return ((x + m - 1) // m) * m


def _padded_layout(n_total: int, itemsize: int):
    """Choose (tile_rows, inner_steps, n_padded) for a model with n_total elems."""
    target_rows = max(_MIN_TILE_ROWS, _TARGET_BLOCK_BYTES // (LANE * itemsize))
    rows_needed = max(1, pl.cdiv(n_total, LANE))
    rows_per_split = max(1, pl.cdiv(rows_needed, NUM_SPLITS))
    inner_steps = max(1, pl.cdiv(rows_per_split, target_rows))
    tile_rows = _round_up(pl.cdiv(rows_per_split, inner_steps), _MIN_TILE_ROWS)
    n_padded = NUM_SPLITS * inner_steps * tile_rows * LANE
    return tile_rows, inner_steps, n_padded


def _flatten_to_rows(tensors, n_total: int, n_padded: int, dtype) -> jax.Array:
    """Flatten + concat all tensors, pad folded into the concat -> (rows, 128)."""
    pieces = [jnp.ravel(t).astype(dtype) for t in tensors]
    pad = n_padded - n_total
    if pad:
        pieces.append(jnp.zeros((pad,), dtype=dtype))
    return jnp.concatenate(pieces).reshape(-1, LANE)


# ----------------------------------------------------------------------------
# Pallas call wrapper
# ----------------------------------------------------------------------------
def _sum_sq_diff_rows(x_rows, y_rows, tile_rows: int, inner_steps: int):
    """sum((x - y)**2) over two lane-dense (rows, 128) buffers."""
    n_elems = x_rows.size
    cost = pl.CostEstimate(
        flops=3 * n_elems,
        transcendentals=0,
        bytes_accessed=(x_rows.size * x_rows.dtype.itemsize
                        + y_rows.size * y_rows.dtype.itemsize
                        + NUM_SPLITS * 8 * LANE * 4),
    )

    partials = pl.pallas_call(
        _drift_kernel,
        out_shape=jax.ShapeDtypeStruct((NUM_SPLITS * 8, LANE), jnp.float32),
        grid_spec=pltpu.PrefetchScalarGridSpec(
            num_scalar_prefetch=0,
            grid=(NUM_SPLITS, inner_steps),
            in_specs=[
                pl.BlockSpec((tile_rows, LANE),
                             lambda p, i: (p * inner_steps + i, 0)),
                pl.BlockSpec((tile_rows, LANE),
                             lambda p, i: (p * inner_steps + i, 0)),
            ],
            # Tiny per-split output block; constant across the reduction axis.
            out_specs=pl.BlockSpec((8, LANE), lambda p, i: (p, 0)),
            scratch_shapes=[pltpu.VMEM((tile_rows, LANE), jnp.float32)],
        ),
        compiler_params=pltpu.CompilerParams(
            dimension_semantics=("parallel", "arbitrary"),
            vmem_limit_bytes=32 * 1024 * 1024,  # v5e default is 16 MiB; we use ~10-16 MiB
        ),
        cost_estimate=cost,
    )(x_rows, y_rows)
    # Remaining wrapper-side reduce is over 8 KiB only (NUM_SPLITS*8 x 128).
    return jnp.sum(partials)


# ----------------------------------------------------------------------------
# Functional API (matches the PyTorch forward signature)
# ----------------------------------------------------------------------------
def _sum_sq_diff_params_impl(model_params, constraint_tensors):
    p_dtype = jnp.result_type(*[p.dtype for p in model_params])
    c_dtype = jnp.result_type(*[c.dtype for c in constraint_tensors])
    n_total = int(sum(p.size for p in model_params))
    itemsize = max(jnp.dtype(p_dtype).itemsize, jnp.dtype(c_dtype).itemsize)
    tile_rows, inner_steps, n_padded = _padded_layout(n_total, itemsize)
    x_rows = _flatten_to_rows(constraint_tensors, n_total, n_padded, c_dtype)
    y_rows = _flatten_to_rows(model_params, n_total, n_padded, p_dtype)
    return _sum_sq_diff_rows(x_rows, y_rows, tile_rows, inner_steps)


@jax.custom_vjp
def _sum_sq_diff_params(model_params, constraint_tensors):
    return _sum_sq_diff_params_impl(model_params, constraint_tensors)


def _sum_sq_diff_params_fwd(model_params, constraint_tensors):
    # Residuals are the original per-layer arrays (already live in the training
    # state) -- no concatenated copies are pinned until backward.
    value = _sum_sq_diff_params_impl(model_params, constraint_tensors)
    return value, (model_params, constraint_tensors)


def _sum_sq_diff_params_bwd(residuals, g):
    model_params, constraint_tensors = residuals
    two_g = 2.0 * g
    grads_p, grads_c = [], []
    for p, c in zip(model_params, constraint_tensors):
        d = p.astype(jnp.float32) - c.astype(jnp.float32)
        gp = two_g * d
        grads_p.append(gp.astype(p.dtype))
        # Constraints are frozen in practice; when this cotangent is unused it
        # is dead-code-eliminated under jit (shares `gp` with the param grad).
        grads_c.append((-gp).astype(c.dtype))
    return grads_p, grads_c


_sum_sq_diff_params.defvjp(_sum_sq_diff_params_fwd, _sum_sq_diff_params_bwd)


def weight_drift_loss(model_params, constraint_tensors, weight) -> jax.Array:
    """JAX/Pallas equivalent of WeightDriftLoss.forward.

    model_params:       list of jnp arrays (differentiable model weights)
    constraint_tensors: list of jnp arrays (frozen reference weights)
    weight:             scalar loss weight
    """
    model_params = list(model_params)
    constraint_tensors = list(constraint_tensors)
    assert len(constraint_tensors) == len(model_params)
    assert len(model_params) > 0
    total = _sum_sq_diff_params(model_params, constraint_tensors)
    return (weight / 2.0) * total


# ----------------------------------------------------------------------------
# Cached-constraint API (frozen constraints flattened/padded ONCE)
# ----------------------------------------------------------------------------
class WeightDriftLoss:
    """Stateful variant: the frozen constraints' (rows, 128) buffer is cached.

    The flatten+pad+concat of the constraint tensors happens once here; each
    call only flattens the (differentiable) model parameters before streaming
    both buffers through the Pallas kernel.
    """

    def __init__(self, constraint_tensors):
        constraints = [jnp.asarray(c) for c in constraint_tensors]
        assert len(constraints) > 0
        self._constraints = constraints
        self._shapes = [tuple(c.shape) for c in constraints]
        n_total = int(sum(c.size for c in constraints))
        c_dtype = jnp.result_type(*[c.dtype for c in constraints])
        tile_rows, inner_steps, n_padded = _padded_layout(
            n_total, jnp.dtype(c_dtype).itemsize)

        # Cached lane-dense (rows, 128) constraint buffer (built once).
        c_rows = _flatten_to_rows(constraints, n_total, n_padded, c_dtype)

        def impl(model_params, c_rows_in):
            p_dtype = jnp.result_type(*[p.dtype for p in model_params])
            y_rows = _flatten_to_rows(model_params, n_total, n_padded, p_dtype)
            return _sum_sq_diff_rows(c_rows_in, y_rows, tile_rows, inner_steps)

        @jax.custom_vjp
        def sum_sq(model_params, c_rows_in):
            return impl(model_params, c_rows_in)

        def sum_sq_fwd(model_params, c_rows_in):
            return impl(model_params, c_rows_in), tuple(model_params)

        def sum_sq_bwd(saved_params, g):
            two_g = 2.0 * g
            grads_p, neg = [], []
            for p, c in zip(saved_params, constraints):
                d = p.astype(jnp.float32) - c.astype(jnp.float32)
                gp = two_g * d
                grads_p.append(gp.astype(p.dtype))
                neg.append(-gp)
            # True cotangent for the cached constraint buffer; constraints are
            # frozen so this concat is dead-code-eliminated under jit.
            g_rows = _flatten_to_rows(neg, n_total, n_padded, jnp.float32)
            return list(grads_p), g_rows.astype(c_rows.dtype)

        sum_sq.defvjp(sum_sq_fwd, sum_sq_bwd)
        self._c_rows = c_rows
        self._sum_sq = sum_sq

    def __call__(self, model_params, weight) -> jax.Array:
        model_params = list(model_params)
        assert len(model_params) == len(self._constraints)
        assert all(tuple(p.shape) == s
                   for p, s in zip(model_params, self._shapes))
        total = self._sum_sq(model_params, self._c_rows)
        return (weight / 2.0) * total


# ----------------------------------------------------------------------------
# Pure-JAX reference (mirrors the PyTorch per-layer norm formulation)
# ----------------------------------------------------------------------------
def _reference_loss(model_params, constraint_tensors, weight) -> jax.Array:
    per_layer = [
        jnp.sum((c.astype(jnp.float32) - p.astype(jnp.float32)) ** 2)
        for c, p in zip(constraint_tensors, model_params)
    ]
    return (weight / 2.0) * jnp.sum(jnp.stack(per_layer))


if __name__ == "__main__":
    key = jax.random.PRNGKey(0)

    # Synthetic "model" parameters: a tiny conv + linear model, matching the
    # kind of parameter lists WeightDriftLoss consumes.
    param_shapes = [
        (4, 3, 3, 3),      # conv weight (out_c, in_c, kh, kw)
        (4,),              # conv bias
        (32, 4 * 8 * 8),   # linear weight
        (32,),             # linear bias
    ]
    keys = jax.random.split(key, 2 * len(param_shapes))
    model_params = [
        jax.random.normal(keys[i], s, dtype=jnp.float32)
        for i, s in enumerate(param_shapes)
    ]
    constraint_tensors = [
        jax.random.normal(keys[len(param_shapes) + i], s, dtype=jnp.float32)
        for i, s in enumerate(param_shapes)
    ]
    weight = 0.75

    ref = jax.block_until_ready(
        _reference_loss(model_params, constraint_tensors, weight))

    # ---- functional path ----------------------------------------------------
    loss = jax.block_until_ready(
        weight_drift_loss(model_params, constraint_tensors, weight))
    assert jnp.allclose(loss, ref, rtol=1e-5, atol=1e-5), (loss, ref)

    grads = jax.block_until_ready(
        jax.grad(lambda ps: weight_drift_loss(ps, constraint_tensors, weight))(
            model_params))
    for g_i, p_i, c_i in zip(grads, model_params, constraint_tensors):
        assert jnp.allclose(g_i, weight * (p_i - c_i), rtol=1e-5, atol=1e-5)

    # ---- cached-constraint path (constraints frozen across steps) ------------
    drift_loss = WeightDriftLoss(constraint_tensors)
    loss_c = jax.block_until_ready(jax.jit(drift_loss)(model_params, weight))
    assert jnp.allclose(loss_c, ref, rtol=1e-5, atol=1e-5), (loss_c, ref)

    grads_c = jax.block_until_ready(
        jax.grad(lambda ps: drift_loss(ps, weight))(model_params))
    for g_i, p_i, c_i in zip(grads_c, model_params, constraint_tensors):
        assert jnp.allclose(g_i, weight * (p_i - c_i), rtol=1e-5, atol=1e-5)

    # ---- bf16 parameters (dtype-scaled tiles) ---------------------------------
    mp_bf16 = [p.astype(jnp.bfloat16) for p in model_params]
    ct_bf16 = [c.astype(jnp.bfloat16) for c in constraint_tensors]
    loss_bf16 = jax.block_until_ready(weight_drift_loss(mp_bf16, ct_bf16, weight))
    ref_bf16 = jax.block_until_ready(_reference_loss(mp_bf16, ct_bf16, weight))
    assert jnp.allclose(loss_bf16, ref_bf16, rtol=1e-3, atol=1e-3), (loss_bf16, ref_bf16)

    print("KERNEL_OK")
</pallas_src>

<mosaic_0001>
module attributes {stable_mosaic.version = 11 : i64} {
  func.func @_drift_kernel(%arg0: i32, %arg1: i32, %arg2: memref<48x128xf32, #tpu.memory_space<vmem>>, %arg3: memref<48x128xf32, #tpu.memory_space<vmem>>, %arg4: memref<8x128xf32, #tpu.memory_space<vmem>>, %arg5: memref<48x128xf32, #tpu.memory_space<vmem>>) attributes {dimension_semantics = [#tpu.dimension_semantics<parallel>, #tpu.dimension_semantics<arbitrary>], iteration_bounds = array<i64: 2, 1>, scalar_prefetch = 0 : i64, scratch_operands = 1 : i64, tpu.core_type = #tpu.core_type<tc>, window_params = [{transform_indices = @transform_0, window_bounds = array<i64: 48, 128>}, {transform_indices = @transform_1, window_bounds = array<i64: 48, 128>}, {transform_indices = @transform_2, window_bounds = array<i64: 8, 128>}]} {
    %c0_i32 = arith.constant 0 : i32
    %0 = arith.cmpi eq, %arg1, %c0_i32 : i32
    %1 = arith.extui %0 : i1 to i32
    %c0_i32_0 = arith.constant 0 : i32
    %2 = arith.cmpi ne, %1, %c0_i32_0 : i32
    scf.if %2 {
      %cst = arith.constant 0.000000e+00 : f32
      %13 = vector.broadcast %cst : f32 to vector<48x128xf32>
      %c0_10 = arith.constant 0 : index
      %c0_11 = arith.constant 0 : index
      %14 = vector.load %arg5[%c0_10, %c0_11] : memref<48x128xf32, #tpu.memory_space<vmem>>, vector<48x128xf32>
      tpu.vector_store %arg5[%c0_10, %c0_11], %13 {strides = array<i32>} : memref<48x128xf32, #tpu.memory_space<vmem>>, vector<48x128xf32>,
    } else {
    }
    %c0 = arith.constant 0 : index
    %c0_1 = arith.constant 0 : index
    %3 = vector.load %arg2[%c0, %c0_1] : memref<48x128xf32, #tpu.memory_space<vmem>>, vector<48x128xf32>
    %c0_2 = arith.constant 0 : index
    %c0_3 = arith.constant 0 : index
    %4 = vector.load %arg3[%c0_2, %c0_3] : memref<48x128xf32, #tpu.memory_space<vmem>>, vector<48x128xf32>
    %5 = arith.subf %3, %4 : vector<48x128xf32>
    %c0_4 = arith.constant 0 : index
    %c0_5 = arith.constant 0 : index
    %6 = vector.load %arg5[%c0_4, %c0_5] : memref<48x128xf32, #tpu.memory_space<vmem>>, vector<48x128xf32>
    %7 = arith.mulf %5, %5 : vector<48x128xf32>
    %8 = arith.addf %6, %7 : vector<48x128xf32>
    %c0_6 = arith.constant 0 : index
    %c0_7 = arith.constant 0 : index
    %9 = vector.load %arg5[%c0_6, %c0_7] : memref<48x128xf32, #tpu.memory_space<vmem>>, vector<48x128xf32>
    tpu.vector_store %arg5[%c0_6, %c0_7], %8 {strides = array<i32>} : memref<48x128xf32, #tpu.memory_space<vmem>>, vector<48x128xf32>,
    %c0_i32_8 = arith.constant 0 : i32
    %10 = arith.cmpi eq, %arg1, %c0_i32_8 : i32
    %11 = arith.extui %10 : i1 to i32
    %c0_i32_9 = arith.constant 0 : i32
    %12 = arith.cmpi ne, %11, %c0_i32_9 : i32
    scf.if %12 {
      %c0_10 = arith.constant 0 : index
      %c0_11 = arith.constant 0 : index
      %13 = vector.load %arg5[%c0_10, %c0_11] : memref<48x128xf32, #tpu.memory_space<vmem>>, vector<48x128xf32>
      %cst = arith.constant dense<0.000000e+00> : vector<128xf32>
      %14 = vector.multi_reduction <add>, %13, %cst [0] : vector<48x128xf32> to vector<128xf32>
      %15 = vector.shape_cast %14 : vector<128xf32> to vector<1x128xf32>
      %16 = tpu.iota {dimensions = array<i32: 0>} : vector<8x128xi32>
      %c0_i32_12 = arith.constant 0 : i32
      %17 = vector.broadcast %c0_i32_12 : i32 to vector<8x128xi32>
      %18 = arith.cmpi eq, %16, %17 : vector<8x128xi32>
      %cst_13 = arith.constant 0.000000e+00 : f32
      %19 = vector.shape_cast %15 : vector<1x128xf32> to vector<1x128xf32>
      %20 = vector.broadcast %19 : vector<1x128xf32> to vector<8x128xf32>
      %21 = vector.broadcast %cst_13 : f32 to vector<8x128xf32>
      %22 = arith.select %18, %20, %21 : vector<8x128xi1>, vector<8x128xf32>
      %c0_14 = arith.constant 0 : index
      %c0_15 = arith.constant 0 : index
      %23 = vector.load %arg4[%c0_14, %c0_15] : memref<8x128xf32, #tpu.memory_space<vmem>>, vector<8x128xf32>
      tpu.vector_store %arg4[%c0_14, %c0_15], %22 {strides = array<i32>} : memref<8x128xf32, #tpu.memory_space<vmem>>, vector<8x128xf32>,
    } else {
    }
    return
  }
  func.func @transform_0(%arg0: i32, %arg1: i32) -> (i32, i32) {
    %c1_i32 = arith.constant 1 : i32
    %0 = arith.muli %arg0, %c1_i32 : i32
    %1 = arith.addi %0, %arg1 : i32
    %c0_i32 = arith.constant 0 : i32
    %c0_i32_0 = arith.constant 0 : i32
    return %1, %c0_i32 : i32, i32
  }
  func.func @transform_1(%arg0: i32, %arg1: i32) -> (i32, i32) {
    %c1_i32 = arith.constant 1 : i32
    %0 = arith.muli %arg0, %c1_i32 : i32
    %1 = arith.addi %0, %arg1 : i32
    %c0_i32 = arith.constant 0 : i32
    %c0_i32_0 = arith.constant 0 : i32
    return %1, %c0_i32 : i32, i32
  }
  func.func @transform_2(%arg0: i32, %arg1: i32) -> (i32, i32) {
    %c0_i32 = arith.constant 0 : i32
    %c0_i32_0 = arith.constant 0 : i32
    return %arg0, %c0_i32 : i32, i32
  }
}

</mosaic_0001>

<llo_original>
// kernel: tpu_custom_call.1
$region0: #{tpu_custom_call.1}
  #allocation0 [shape = 'u32[]', space=smem, size = 0x4, offset = 0x4, fixed_abs, tag = 'smem constant byte address 0x4 - core index']
  #allocation1 [shape = 'u32[72,128]{1,0:T(1,128)}', space=vmem, size = 0x9000, scoped, tag = 'internal scratch']
  #allocation2 [shape = 'f32[48,128]{1,0:T(8,128)}', space=vmem, size = 0x6000, scoped, tag = 'scratch operand']
  %s0 = inlined_call_operand.hbm [shape: f32[96,128], index: 0, kind: input, shape index: {}]
  %s1 = inlined_call_operand.hbm [shape: f32[96,128], index: 1, kind: input, shape index: {}]
  %s2 = inlined_call_operand.hbm [shape: f32[16,128], index: 2, kind: output, shape index: {}]
  %s3 = sld [smem:[#allocation0]]
  $region57: #{tpu_custom_call.1} parent=0
    _
  %s5 = ssub.s32 1, %s3
  %s6 = scalar_select 0, %s5, %s3
  $region1: #{tpu_custom_call.1} parent=0
    #allocation3 [shape = 'u8[49152]{0}', space=vmem, size = 0xc000, scoped, tag = 'input window, operand 0']
    #allocation4 [shape = 's32[2]{0}', space=sflag, size = 0x8, scoped, tag = 'scoped memory for tpu_custom_call.1']
    #allocation5 [shape = 's32[2]{0}', space=sflag, size = 0x8, scoped, tag = 'scoped memory for tpu_custom_call.1']
    #allocation6 [shape = 'u8[49152]{0}', space=vmem, size = 0xc000, scoped, tag = 'input window, operand 1']
    #allocation7 [shape = 's32[2]{0}', space=sflag, size = 0x8, scoped, tag = 'scoped memory for tpu_custom_call.1']
    #allocation8 [shape = 'u8[8192]{0}', space=vmem, size = 0x2000, scoped, tag = 'output window, operand 0']
    %7 = vsyncpa [#allocation4], 0
    %s8 = scalar_lea.sflag [#allocation4], 1
    %9 = vsyncpa %s8, 0
    %10 = vsyncpa [#allocation7], 0
    %s11 = scalar_lea.sflag [#allocation7], 1
    %12 = vsyncpa %s11, 0
    %13 = vsyncpa [#allocation5], 0
    %s14 = scalar_lea.sflag [#allocation5], 1
    %15 = vsyncpa %s14, 0
    loop: start=0, step=1, limit=4
    $region2: #{tpu_custom_call.1} parent=1 // loop_pre_header
      _
    $region3: #{tpu_custom_call.1} parent=1 // loop_header
      %s17 = sphi 0, %s21
      %p18 = scmp.ge.s32.totalorder %s17, 4
      %s24 = sphi 0, %s36
      %s25 = sphi 0, %s32
      %s26 = sphi 0, %s24
      %s27 = sphi 0, %s25
      %s28 = sphi 0, %s26
      %s29 = sphi 0, %s27
      %s41 = sphi 0, %s43
      %s44 = sphi 0, %s41
      %s45 = sphi 0, %s44
      %s61 = sphi 0, %s45
      %s69 = sphi 0, %s71
      %s72 = sphi 0, %s69
      %s73 = sphi 0, %s72
      %s89 = sphi 0, %s73
      %s95 = sphi 0, %s97
      %s98 = sphi 0, %s95
      %s99 = sphi 0, %s98
      %s115 = sphi 0, %s99
    $region4: #{tpu_custom_call.1} parent=1 // loop_header_branch
      %20 = sbr.rel (%p18) target = $region8
    $region5: #{tpu_custom_call.1} parent=1 // loop_body
      %s22 = ssub.s32 %s17, 1
      %s23 = ssub.s32 %s17, 2
      %s30 = sadd.s32 1, %s25
      %p31 = scmp.ge.s32.totalorder %s30, 1
      %s32 = scalar_select %p31, 0, %s30
      %s33 = sadd.s32 1, %s24
      %s34 = scalar_select %p31, %s33, %s24
      %p35 = scmp.ge.s32.totalorder %s34, 2
      %s36 = scalar_select %p35, 0, %s34
      %s37 = sadd.s32 %s24, %s25
      %s38 = sadd.s32 %s36, %s32
      %s39 = ssub.s32 %s37, %s38
      %p40 = scmp.eq.s32.totalorder %s39, 0
      %s42 = sadd.s32 %s41, 1
      %s43 = scalar_select %p40, %s41, %s42
      %p46 = pneg %p40
      %p47 = scmp.eq.s32.totalorder %s17, 1
      %p48 = por %p46, %p47
      %p49 = scmp.ne.s32.totalorder %s41, %s44
      %p50 = scmp.eq.s32.totalorder %s17, 0
      %p51 = por %p49, %p50
      %p52 = scmp.ne.s32.totalorder %s41, %s44
      %p53 = scmp.eq.s32.totalorder %s22, 1
      %p54 = por %p52, %p53
      %p55 = scmp.ne.s32.totalorder %s44, %s45
      %p56 = scmp.eq.s32.totalorder %s22, 0
      %p57 = por %p55, %p56
      %p58 = scmp.ne.s32.totalorder %s44, %s45
      %p59 = scmp.eq.s32.totalorder %s23, 1
      %p60 = por %p58, %p59
      %p62 = scmp.ne.s32.totalorder %s45, %s61
      %p63 = scmp.eq.s32.totalorder %s23, 0
      %p64 = por %p62, %p63
      %s65 = sadd.s32 %s24, %s25
      %s66 = sadd.s32 %s36, %s32
      %s67 = ssub.s32 %s65, %s66
      %p68 = scmp.eq.s32.totalorder %s67, 0
      %s70 = sadd.s32 %s69, 1
      %s71 = scalar_select %p68, %s69, %s70
      %p74 = pneg %p68
      %p75 = scmp.eq.s32.totalorder %s17, 1
      %p76 = por %p74, %p75
      %p77 = scmp.ne.s32.totalorder %s69, %s72
      %p78 = scmp.eq.s32.totalorder %s17, 0
      %p79 = por %p77, %p78
      %p80 = scmp.ne.s32.totalorder %s69, %s72
      %p81 = scmp.eq.s32.totalorder %s22, 1
      %p82 = por %p80, %p81
      %p83 = scmp.ne.s32.totalorder %s72, %s73
      %p84 = scmp.eq.s32.totalorder %s22, 0
      %p85 = por %p83, %p84
      %p86 = scmp.ne.s32.totalorder %s72, %s73
      %p87 = scmp.eq.s32.totalorder %s23, 1
      %p88 = por %p86, %p87
      %p90 = scmp.ne.s32.totalorder %s73, %s89
      %p91 = scmp.eq.s32.totalorder %s23, 0
      %p92 = por %p90, %p91
      %s93 = ssub.s32 %s24, %s36
      %p94 = scmp.eq.s32.totalorder %s93, 0
      %s96 = sadd.s32 %s95, 1
      %s97 = scalar_select %p94, %s95, %s96
      %p100 = pneg %p94
      %p101 = scmp.eq.s32.totalorder %s17, 1
      %p102 = por %p100, %p101
      %p103 = scmp.ne.s32.totalorder %s95, %s98
      %p104 = scmp.eq.s32.totalorder %s17, 0
      %p105 = por %p103, %p104
      %p106 = scmp.ne.s32.totalorder %s95, %s98
      %p107 = scmp.eq.s32.totalorder %s22, 1
      %p108 = por %p106, %p107
      %p109 = scmp.ne.s32.totalorder %s98, %s99
      %p110 = scmp.eq.s32.totalorder %s22, 0
      %p111 = por %p109, %p110
      %p112 = scmp.ne.s32.totalorder %s98, %s99
      %p113 = scmp.eq.s32.totalorder %s23, 1
      %p114 = por %p112, %p113
      %p116 = scmp.ne.s32.totalorder %s99, %s115
      %p117 = scmp.eq.s32.totalorder %s23, 0
      %p118 = por %p116, %p117
      %p119 = scmp.le.s32.totalorder 1, %s17
      %p120 = scmp.lt.s32.totalorder %s17, 3
      %p121 = pnand %p119, %p120
      %p122 = pneg %p121
      // Predicated region
      $region9: #{tpu_custom_call.1} parent=5 // pred_check
        _
      $region10: #{tpu_custom_call.1} parent=5 // pred_check_branch
        %124 = sbr.rel (%p121) target = $region12
      $region11: #{tpu_custom_call.1} parent=5 // pred_region
        %s125 = ssub.s32 %s17, 1
      $region12: #{tpu_custom_call.1} parent=5 // pred_fallthru
        _
      %p126 = scmp.lt.s32.totalorder %s17, 2
      // Predicated region
      $region13: #{tpu_custom_call.1} parent=5 // pred_check
        %p127 = pneg %p126
      $region14: #{tpu_custom_call.1} parent=5 // pred_check_branch
        %129 = sbr.rel (%p127) target = $region16
      $region15: #{tpu_custom_call.1} parent=5 // pred_region
        // Predicated region
        $region17: #{tpu_custom_call.1} parent=15 // pred_check
          %p130 = pneg %p51
        $region18: #{tpu_custom_call.1} parent=15 // pred_check_branch
          %132 = sbr.rel (%p130) target = $region20
        $region19: #{tpu_custom_call.1} parent=15 // pred_region
          %s133 = sand.u32 %s41, 1
          %s134 = scalar_lea.sflag [#allocation4], %s133
          %s135 = sand.u32 %s41, 1
          %s136 = smul.addr %s135, 48
          %s137 = scalar_lea.vmem [#allocation3], %s136
          %s138 = sadd.s32 %s24, %s25
          %s139 = smul.u32 6, %s138
          %141 = vsyncadd %s134, 0
          %s142 = smul.addr %s139, 8
          %s143 = scalar_lea.hbm %s0, %s142
          %s144 = sshll.u32 %s143, 4
          %s145 = int_to_ptr.hbm [resolvable:$true] %s144
          %s146 = sshll.u32 %s137, 4
          %s147 = int_to_ptr.vmem [resolvable:$true] %s146
          %152 = dma.hbm_to_vmem [thread:$0]  %s145, 768, %s147, %s134, 128, 128, 8
        $region20: #{tpu_custom_call.1} parent=15 // pred_fallthru
          _
        // Predicated region
        $region21: #{tpu_custom_call.1} parent=15 // pred_check
          %p153 = pneg %p79
        $region22: #{tpu_custom_call.1} parent=15 // pred_check_branch
          %155 = sbr.rel (%p153) target = $region24
        $region23: #{tpu_custom_call.1} parent=15 // pred_region
          %s156 = sand.u32 %s69, 1
          %s157 = scalar_lea.sflag [#allocation7], %s156
          %s158 = sand.u32 %s69, 1
          %s159 = smul.addr %s158, 48
          %s160 = scalar_lea.vmem [#allocation6], %s159
          %s161 = sadd.s32 %s24, %s25
          %s162 = smul.u32 6, %s161
          %164 = vsyncadd %s157, 0
          %s165 = smul.addr %s162, 8
          %s166 = scalar_lea.hbm %s1, %s165
          %s167 = sshll.u32 %s166, 4
          %s168 = int_to_ptr.hbm [resolvable:$true] %s167
          %s169 = sshll.u32 %s160, 4
          %s170 = int_to_ptr.vmem [resolvable:$true] %s169
          %175 = dma.hbm_to_vmem [thread:$0]  %s168, 768, %s170, %s157, 128, 128, 8
        $region24: #{tpu_custom_call.1} parent=15 // pred_fallthru
          _
      $region16: #{tpu_custom_call.1} parent=5 // pred_fallthru
        _
      %p176 = scmp.le.s32.totalorder 1, %s17
      %p177 = scmp.lt.s32.totalorder %s17, 3
      %p178 = pnand %p176, %p177
      %p179 = pneg %p178
      // Predicated region
      $region25: #{tpu_custom_call.1} parent=5 // pred_check
        _
      $region26: #{tpu_custom_call.1} parent=5 // pred_check_branch
        %181 = sbr.rel (%p178) target = $region28
      $region27: #{tpu_custom_call.1} parent=5 // pred_region
        %s182 = ssub.s32 %s17, 1
        %s183 = sand.u32 %s44, 1
        %s184 = scalar_lea.sflag [#allocation4], %s183
        %s185 = sand.u32 %s44, 1
        %s186 = smul.addr %s185, 48
        %s187 = scalar_lea.vmem [#allocation3], %s186
        // Predicated region
        $region29: #{tpu_custom_call.1} parent=27 // pred_check
          %p188 = pneg %p57
        $region30: #{tpu_custom_call.1} parent=27 // pred_check_branch
          %190 = sbr.rel (%p188) target = $region32
        $region31: #{tpu_custom_call.1} parent=27 // pred_region
          %192 = dma.done %s184, 768
        $region32: #{tpu_custom_call.1} parent=27 // pred_fallthru
          _
        %s193 = sand.u32 %s72, 1
        %s194 = scalar_lea.sflag [#allocation7], %s193
        %s195 = sand.u32 %s72, 1
        %s196 = smul.addr %s195, 48
        %s197 = scalar_lea.vmem [#allocation6], %s196
        // Predicated region
        $region33: #{tpu_custom_call.1} parent=27 // pred_check
          %p198 = pneg %p85
        $region34: #{tpu_custom_call.1} parent=27 // pred_check_branch
          %200 = sbr.rel (%p198) target = $region36
        $region35: #{tpu_custom_call.1} parent=27 // pred_region
          %202 = dma.done %s194, 768
        $region36: #{tpu_custom_call.1} parent=27 // pred_fallthru
          _
        %s203 = sand.u32 %s44, 1
        %s204 = scalar_lea.sflag [#allocation4], %s203
        %s205 = sand.u32 %s44, 1
        %s206 = smul.addr %s205, 48
        %s207 = scalar_lea.vmem [#allocation3], %s206
        %p208 = pneg %p57
        %p209 = pneg %p54
        %s210 = sand.u32 %s72, 1
        %s211 = scalar_lea.sflag [#allocation7], %s210
        %s212 = sand.u32 %s72, 1
        %s213 = smul.addr %s212, 48
        %s214 = scalar_lea.vmem [#allocation6], %s213
        %p215 = pneg %p85
        %p216 = pneg %p82
        %p217 = pneg %p111
        %p218 = pneg %p108
        %s219 = sand.u32 %s98, 1
        %s220 = scalar_lea.sflag [#allocation5], %s219
        %s221 = sand.u32 %s98, 1
        %s222 = smul.addr %s221, 8
        %s223 = scalar_lea.vmem [#allocation8], %s222
        %s224 = sadd.s32 %s26, %s27
        %s225 = smul.u32 6, %s224
        %s226 = sadd.s32 %s26, %s27
        %s227 = smul.u32 6, %s226
        %p228 = scmp.eq.s32.totalorder %s27, 0
        // Predicated region
        $region37: #{tpu_custom_call.1} parent=27 // pred_check
          %p229 = pneg %p228
        $region38: #{tpu_custom_call.1} parent=27 // pred_check_branch
          %231 = sbr.rel (%p229) target = $region40
        $region39: #{tpu_custom_call.1} parent=27 // pred_region
          %232 = vst [vmem:[#allocation2] sm:$0xff] 0.0
          %233 = vst [vmem:[#allocation2 + $0x8] sm:$0xff] 0.0
          %234 = vst [vmem:[#allocation2 + $0x10] sm:$0xff] 0.0
          %235 = vst [vmem:[#allocation2 + $0x18] sm:$0xff] 0.0
          %236 = vst [vmem:[#allocation2 + $0x20] sm:$0xff] 0.0
          %237 = vst [vmem:[#allocation2 + $0x28] sm:$0xff] 0.0
        $region40: #{tpu_custom_call.1} parent=27 // pred_fallthru
          _
        %v238 = vld [vmem:[%s187] sm:$0xff]
        %v239 = vld [vmem:[%s187 + $0x8] sm:$0xff]
        %v240 = vld [vmem:[%s187 + $0x10] sm:$0xff]
        %v241 = vld [vmem:[%s187 + $0x18] sm:$0xff]
        %v242 = vld [vmem:[%s187 + $0x20] sm:$0xff]
        %v243 = vld [vmem:[%s187 + $0x28] sm:$0xff]
        %v244 = vld [vmem:[%s197] sm:$0xff]
        %v245 = vld [vmem:[%s197 + $0x8] sm:$0xff]
        %v246 = vld [vmem:[%s197 + $0x10] sm:$0xff]
        %v247 = vld [vmem:[%s197 + $0x18] sm:$0xff]
        %v248 = vld [vmem:[%s197 + $0x20] sm:$0xff]
        %v249 = vld [vmem:[%s197 + $0x28] sm:$0xff]
        %v250 = vsub.f32 %v238, %v244
        %v251 = vsub.f32 %v239, %v245
        %v252 = vsub.f32 %v240, %v246
        %v253 = vsub.f32 %v241, %v247
        %v254 = vsub.f32 %v242, %v248
        %v255 = vsub.f32 %v243, %v249
        %v256 = vld [vmem:[#allocation2] sm:$0xff]
        %v257 = vld [vmem:[#allocation2 + $0x8] sm:$0xff]
        %v258 = vld [vmem:[#allocation2 + $0x10] sm:$0xff]
        %v259 = vld [vmem:[#allocation2 + $0x18] sm:$0xff]
        %v260 = vld [vmem:[#allocation2 + $0x20] sm:$0xff]
        %v261 = vld [vmem:[#allocation2 + $0x28] sm:$0xff]
        %v262 = vmul.f32 %v250, %v250
        %v263 = vmul.f32 %v251, %v251
        %v264 = vmul.f32 %v252, %v252
        %v265 = vmul.f32 %v253, %v253
        %v266 = vmul.f32 %v254, %v254
        %v267 = vmul.f32 %v255, %v255
        %v268 = vadd.f32 %v256, %v262
        %v269 = vadd.f32 %v257, %v263
        %v270 = vadd.f32 %v258, %v264
        %v271 = vadd.f32 %v259, %v265
        %v272 = vadd.f32 %v260, %v266
        %v273 = vadd.f32 %v261, %v267
        %274 = vst [vmem:[#allocation2] sm:$0xff] %v268
        %275 = vst [vmem:[#allocation2 + $0x8] sm:$0xff] %v269
        %276 = vst [vmem:[#allocation2 + $0x10] sm:$0xff] %v270
        %277 = vst [vmem:[#allocation2 + $0x18] sm:$0xff] %v271
        %278 = vst [vmem:[#allocation2 + $0x20] sm:$0xff] %v272
        %279 = vst [vmem:[#allocation2 + $0x28] sm:$0xff] %v273
        // Predicated region
        $region41: #{tpu_custom_call.1} parent=27 // pred_check
          %p280 = pneg %p228
        $region42: #{tpu_custom_call.1} parent=27 // pred_check_branch
          %282 = sbr.rel (%p280) target = $region44
        $region43: #{tpu_custom_call.1} parent=27 // pred_region
          %v283 = vld [vmem:[#allocation2] sm:$0xff]
          %v284 = vld [vmem:[#allocation2 + $0x8] sm:$0xff]
          %v285 = vld [vmem:[#allocation2 + $0x10] sm:$0xff]
          %v286 = vld [vmem:[#allocation2 + $0x18] sm:$0xff]
          %v287 = vld [vmem:[#allocation2 + $0x20] sm:$0xff]
          %v288 = vld [vmem:[#allocation2 + $0x28] sm:$0xff]
          %v289 = vadd.f32 %v283, %v284
          %v290 = vadd.f32 %v289, %v285
          %v291 = vadd.f32 %v290, %v286
          %v292 = vadd.f32 %v291, %v287
          %v293 = vadd.f32 %v292, %v288
          %v294 = vrot.slane %v293, 4
          %v295 = vadd.f32 %v293, %v294
          %v296 = vrot.slane %v295, 2
          %v297 = vadd.f32 %v295, %v296
          %v298 = vrot.slane %v297, 1
          %v299 = vadd.f32 %v297, %v298
          %v300 = vlaneseq
          %v301 = vshrl.u32 %v300, 7
          %vm302 = vcmp.eq.s32.totalorder %v301, 0
          %v303 = vsel %vm302, %v299, 0.0
          %304 = vst [vmem:[%s223] sm:$0xff] %v303
        $region44: #{tpu_custom_call.1} parent=27 // pred_fallthru
          _
        %s305 = sand.u32 %s98, 1
        %s306 = scalar_lea.sflag [#allocation5], %s305
        %s307 = sand.u32 %s98, 1
        %s308 = smul.addr %s307, 8
        %s309 = scalar_lea.vmem [#allocation8], %s308
        // Predicated region
        $region45: #{tpu_custom_call.1} parent=27 // pred_check
          %p310 = pneg %p108
        $region46: #{tpu_custom_call.1} parent=27 // pred_check_branch
          %312 = sbr.rel (%p310) target = $region48
        $region47: #{tpu_custom_call.1} parent=27 // pred_region
          %314 = vsyncadd %s306, 0
          %s315 = smul.addr %s26, 8
          %s316 = scalar_lea.hbm %s2, %s315
          %s318 = sshll.u32 %s309, 4
          %s319 = int_to_ptr.vmem [resolvable:$true] %s318
          %s320 = sshll.u32 %s316, 4
          %s321 = int_to_ptr.hbm [resolvable:$true] %s320
          %323 = dma.vmem_to_hbm [thread:$0]  %s319, 128, %s321, %s306
        $region48: #{tpu_custom_call.1} parent=27 // pred_fallthru
          _
      $region28: #{tpu_custom_call.1} parent=5 // pred_fallthru
        _
      %p324 = scmp.le.s32.totalorder 2, %s17
      // Predicated region
      $region49: #{tpu_custom_call.1} parent=5 // pred_check
        %p325 = pneg %p324
      $region50: #{tpu_custom_call.1} parent=5 // pred_check_branch
        %327 = sbr.rel (%p325) target = $region52
      $region51: #{tpu_custom_call.1} parent=5 // pred_region
        %s328 = ssub.s32 %s17, 2
        // Predicated region
        $region53: #{tpu_custom_call.1} parent=51 // pred_check
          %p329 = pneg %p114
        $region54: #{tpu_custom_call.1} parent=51 // pred_check_branch
          %331 = sbr.rel (%p329) target = $region56
        $region55: #{tpu_custom_call.1} parent=51 // pred_region
          %s332 = sand.u32 %s99, 1
          %s333 = scalar_lea.sflag [#allocation5], %s332
          %s334 = sand.u32 %s99, 1
          %s335 = smul.addr %s334, 8
          %s336 = scalar_lea.vmem [#allocation8], %s335
          %338 = dma.done %s333, 128
        $region56: #{tpu_custom_call.1} parent=51 // pred_fallthru
          _
      $region52: #{tpu_custom_call.1} parent=5 // pred_fallthru
        _
    $region6: #{tpu_custom_call.1} parent=1 // loop_footer
      %s21 = sadd.s32 1, %s17
    $region7: #{tpu_custom_call.1} parent=1 // loop_footer_branch
      %16 = sbr.rel target = $region3
    $region8: #{tpu_custom_call.1} parent=1 // loop_exit
      _
    %339 = vsyncpa [#allocation4], 1
    %s340 = scalar_lea.sflag [#allocation4], 1
    %341 = vsyncpa %s340, 1
    %342 = vsyncpa [#allocation7], 1
    %s343 = scalar_lea.sflag [#allocation7], 1
    %344 = vsyncpa %s343, 1
    %345 = vsyncpa [#allocation5], 1
    %s346 = scalar_lea.sflag [#allocation5], 1
    %347 = vsyncpa %s346, 1

</llo_original>
